<compile_context>
chip_gen: v6e
topology: v6e:2x2x1
jax: 0.10.0
libtpu: 0.0.40
codegen_flags: <defaults>
</compile_context>

<pallas_src>
import functools
import math

import jax
import jax.numpy as jnp
from jax.experimental import pallas as pl
from jax.experimental.pallas import tpu as pltpu


# ----------------------------- glue (plain JAX) -----------------------------

def window_partition(x_nhwc, wsh, wsw):
    """(B, H, W, C) -> (B, (H//wsh)*(W//wsw), wsh*wsw*C), same order as torch."""
    b, h, w, c = x_nhwc.shape
    x = x_nhwc.reshape(b, h // wsh, wsh, w // wsw, wsw, c)
    x = jnp.transpose(x, (0, 1, 3, 2, 4, 5))
    return x.reshape(b, (h // wsh) * (w // wsw), wsh * wsw * c)


def window_reverse(windows, wsh, wsw, h, w):
    """Inverse of window_partition: (B, n, wsh*wsw*C) -> (B, H, W, C)."""
    b = windows.shape[0]
    x = windows.reshape(b, h // wsh, w // wsw, wsh, wsw, -1)
    x = jnp.transpose(x, (0, 1, 3, 2, 4, 5))
    return x.reshape(b, h, w, -1)


def _choose_tile_l(L, max_lanes=2048):
    """Largest lane-dense (multiple-of-128) tile <= max_lanes dividing L."""
    if L <= max_lanes or L % 128 != 0:
        # Small L, or L not 128-aligned: must use the full extent (allowed).
        return L
    for tl in range(max_lanes, 127, -128):
        if L % tl == 0:
            return tl
    return L


# ------------------------------ Pallas kernels -------------------------------

def sa_v3_dist_kernel(y_ref, wq_t_ref, wk_t_ref, dist_ref, *, norm_fact):
    """dist = softmax((y Wq^T)(y Wk^T)^T * norm_fact) for one batch element."""
    y = y_ref[...].astype(jnp.float32)                      # (n, C)
    q = jnp.dot(y, wq_t_ref[...].astype(jnp.float32),
                preferred_element_type=jnp.float32)          # (n, dim_k)
    k = jnp.dot(y, wk_t_ref[...].astype(jnp.float32),
                preferred_element_type=jnp.float32)          # (n, dim_k)
    s = jnp.dot(q, k.T, preferred_element_type=jnp.float32) * norm_fact
    s = s - jnp.max(s, axis=-1, keepdims=True)
    p = jnp.exp(s)
    inv = pl.reciprocal(jnp.sum(p, axis=-1, keepdims=True), approx=True)
    dist_ref[...] = (p * inv).astype(dist_ref.dtype)


def sa_v3_apply_kernel(dist_ref, v_ref, out_ref):
    """Streaming out_tile = dist @ v_tile (v kept in its storage dtype)."""
    v = v_ref[...]                                           # (n, TL)
    d = dist_ref[...].astype(v.dtype)                        # (n, n)
    out_ref[...] = jnp.dot(d, v,
                           preferred_element_type=jnp.float32).astype(out_ref.dtype)


# --------------------------------- wrapper -----------------------------------

def sa_v3_forward(x_nchw, wq, wk, pool_size):
    """Forward pass of SA_v3.  x_nchw: (B, C, H, W); wq, wk: (dim_k, num_feat)."""
    B, C, H, W = x_nchw.shape
    P = pool_size
    assert H % P == 0 and W % P == 0
    wsh, wsw = H // P, W // P
    n = P * P
    L = wsh * wsw * C
    dim_k = wq.shape[0]
    norm_fact = 1.0 / math.sqrt(dim_k)

    # Layout plumbing + tiny pool reduction in plain JAX (perf review).
    x_nhwc = jnp.transpose(x_nchw, (0, 2, 3, 1))
    v = window_partition(x_nhwc, wsh, wsw)                   # (B, n, L)
    y = x_nchw.reshape(B, C, P, wsh, P, wsw).mean(axis=(3, 5))
    y = jnp.transpose(y.reshape(B, C, n), (0, 2, 1)).astype(jnp.float32)  # (B, n, C)
    wq_t = jnp.transpose(wq).astype(jnp.float32)             # (C, dim_k)
    wk_t = jnp.transpose(wk).astype(jnp.float32)             # (C, dim_k)

    vmem_params = dict(vmem_limit_bytes=32 * 1024 * 1024)

    # --- kernel 1: attention scores, once per batch element (tiny) ----------
    dist = pl.pallas_call(
        functools.partial(sa_v3_dist_kernel, norm_fact=norm_fact),
        out_shape=jax.ShapeDtypeStruct((B, n, n), jnp.float32),
        grid=(B,),
        in_specs=[
            pl.BlockSpec((pl.Squeezed(), n, C), lambda b: (b, 0, 0)),
            pl.BlockSpec((C, dim_k), lambda b: (0, 0)),
            pl.BlockSpec((C, dim_k), lambda b: (0, 0)),
        ],
        out_specs=pl.BlockSpec((pl.Squeezed(), n, n), lambda b: (b, 0, 0)),
        compiler_params=pltpu.CompilerParams(
            dimension_semantics=("parallel",), **vmem_params),
    )(y, wq_t, wk_t)

    # --- kernel 2: streaming dist @ v over lane-dense L tiles ---------------
    TL = _choose_tile_l(L)
    out_windows = pl.pallas_call(
        sa_v3_apply_kernel,
        out_shape=jax.ShapeDtypeStruct((B, n, L), x_nchw.dtype),
        grid=(B, L // TL),
        in_specs=[
            pl.BlockSpec((pl.Squeezed(), n, n), lambda b, l: (b, 0, 0)),
            pl.BlockSpec((pl.Squeezed(), n, TL), lambda b, l: (b, 0, l)),
        ],
        out_specs=pl.BlockSpec((pl.Squeezed(), n, TL), lambda b, l: (b, 0, l)),
        compiler_params=pltpu.CompilerParams(
            dimension_semantics=("parallel", "parallel"), **vmem_params),
    )(dist, v)

    att_nhwc = window_reverse(out_windows, wsh, wsw, H, W)   # (B, H, W, C)
    return jnp.transpose(att_nhwc, (0, 3, 1, 2))             # NCHW, like PyTorch


# ------------------------------ pure-JAX reference ---------------------------

def sa_v3_reference(x, wq, wk, pool_size):
    B, C, H, W = x.shape
    P = pool_size
    wsh, wsw = H // P, W // P
    n = P * P
    y = x.reshape(B, C, P, wsh, P, wsw).mean(axis=(3, 5)).reshape(B, C, n)
    y = jnp.transpose(y, (0, 2, 1))                           # (B, n, C)
    q = y @ wq.T
    k = y @ wk.T
    v = window_partition(jnp.transpose(x, (0, 2, 3, 1)), wsh, wsw)
    dist = jnp.einsum('bnd,bmd->bnm', q, k) / math.sqrt(wq.shape[0])
    dist = jax.nn.softmax(dist, axis=-1)
    att = jnp.einsum('bnm,bml->bnl', dist, v)
    att = window_reverse(att, wsh, wsw, H, W)
    return jnp.transpose(att, (0, 3, 1, 2))


# ----------------------------------- main ------------------------------------

if __name__ == "__main__":
    configs = [
        # (B, C, H, W, pool_size, dim_k)
        (2, 4, 16, 16, 4, 8),    # small: L = 64 (single full-extent tile)
        (2, 16, 64, 64, 4, 8),   # larger: L = 4096 -> two 2048-lane tiles
    ]
    for (B, C, H, W, P, dim_k) in configs:
        key = jax.random.PRNGKey(0)
        kx, kq, kk = jax.random.split(key, 3)
        x = jax.random.normal(kx, (B, C, H, W), jnp.float32)
        # nn.Linear(num_feat, dim_k, bias=False).weight has shape (dim_k, num_feat)
        wq = jax.random.normal(kq, (dim_k, C), jnp.float32) * 0.1
        wk = jax.random.normal(kk, (dim_k, C), jnp.float32) * 0.1

        out = jax.block_until_ready(sa_v3_forward(x, wq, wk, P))
        assert out.shape == (B, C, H, W), out.shape

        ref = jax.block_until_ready(sa_v3_reference(x, wq, wk, P))
        err = float(jnp.max(jnp.abs(out - ref)))
        # approx=True reciprocal in the softmax gives ~1e-4 relative error
        assert err < 1e-2, err

    print("KERNEL_OK")
</pallas_src>

<mosaic_0001>
module attributes {stable_mosaic.version = 11 : i64} {
  func.func @sa_v3_dist_kernel(%arg0: i32, %arg1: memref<1x16x4xf32, #tpu.memory_space<vmem>>, %arg2: memref<4x8xf32, #tpu.memory_space<vmem>>, %arg3: memref<4x8xf32, #tpu.memory_space<vmem>>, %arg4: memref<1x16x16xf32, #tpu.memory_space<vmem>>) attributes {dimension_semantics = [#tpu.dimension_semantics<parallel>], iteration_bounds = array<i64: 2>, scalar_prefetch = 0 : i64, scratch_operands = 0 : i64, tpu.core_type = #tpu.core_type<tc>, window_params = [{transform_indices = @transform_0, window_bounds = array<i64: 1, 16, 4>}, {pipeline_mode = #tpu.pipeline_mode<synchronous>, transform_indices = @transform_1, window_bounds = array<i64: 4, 8>}, {pipeline_mode = #tpu.pipeline_mode<synchronous>, transform_indices = @transform_2, window_bounds = array<i64: 4, 8>}, {transform_indices = @transform_3, window_bounds = array<i64: 1, 16, 16>}]} {
    %c0 = arith.constant 0 : index
    %c0_0 = arith.constant 0 : index
    %c0_1 = arith.constant 0 : index
    %0 = vector.load %arg1[%c0, %c0_0, %c0_1] : memref<1x16x4xf32, #tpu.memory_space<vmem>>, vector<1x16x4xf32>
    %1 = vector.shape_cast %0 : vector<1x16x4xf32> to vector<16x4xf32>
    %c0_2 = arith.constant 0 : index
    %c0_3 = arith.constant 0 : index
    %2 = vector.load %arg2[%c0_2, %c0_3] : memref<4x8xf32, #tpu.memory_space<vmem>>, vector<4x8xf32>
    %cst = arith.constant dense<0.000000e+00> : vector<16x8xf32>
    %3 = tpu.matmul %1, %2, %cst {dimension_numbers = #tpu.dot_dimension_numbers<[1], [0], [0], [1], [0, 0, 1, 1], [], []>} : vector<16x4xf32>, vector<4x8xf32>, vector<16x8xf32> -> vector<16x8xf32>
    %c0_4 = arith.constant 0 : index
    %c0_5 = arith.constant 0 : index
    %4 = vector.load %arg3[%c0_4, %c0_5] : memref<4x8xf32, #tpu.memory_space<vmem>>, vector<4x8xf32>
    %cst_6 = arith.constant dense<0.000000e+00> : vector<16x8xf32>
    %5 = tpu.matmul %1, %4, %cst_6 {dimension_numbers = #tpu.dot_dimension_numbers<[1], [0], [0], [1], [0, 0, 1, 1], [], []>} : vector<16x4xf32>, vector<4x8xf32>, vector<16x8xf32> -> vector<16x8xf32>
    %6 = tpu.transpose %5, [1, 0] : vector<16x8xf32> -> vector<8x16xf32>
    %cst_7 = arith.constant dense<0.000000e+00> : vector<16x16xf32>
    %7 = tpu.matmul %3, %6, %cst_7 {dimension_numbers = #tpu.dot_dimension_numbers<[1], [0], [0], [1], [0, 0, 1, 1], [], []>} : vector<16x8xf32>, vector<8x16xf32>, vector<16x16xf32> -> vector<16x16xf32>
    %cst_8 = arith.constant 0.353553385 : f32
    %8 = vector.broadcast %cst_8 : f32 to vector<16x16xf32>
    %9 = arith.mulf %7, %8 : vector<16x16xf32>
    %cst_9 = arith.constant dense<0xFF800000> : vector<16xf32>
    %10 = vector.multi_reduction <maximumf>, %9, %cst_9 [1] : vector<16x16xf32> to vector<16xf32>
    %11 = vector.shape_cast %10 : vector<16xf32> to vector<16x1xf32>
    %12 = vector.broadcast %11 : vector<16x1xf32> to vector<16x16xf32>
    %13 = arith.subf %9, %12 : vector<16x16xf32>
    %14 = math.exp %13 : vector<16x16xf32>
    %cst_10 = arith.constant dense<0.000000e+00> : vector<16xf32>
    %15 = vector.multi_reduction <add>, %14, %cst_10 [1] : vector<16x16xf32> to vector<16xf32>
    %16 = vector.shape_cast %15 : vector<16xf32> to vector<16x1xf32>
    %17 = tpu.reciprocal %16 {approx = true} : vector<16x1xf32> -> vector<16x1xf32>
    %18 = vector.broadcast %17 : vector<16x1xf32> to vector<16x16xf32>
    %19 = arith.mulf %14, %18 : vector<16x16xf32>
    %c0_11 = arith.constant 0 : index
    %c0_12 = arith.constant 0 : index
    %c0_13 = arith.constant 0 : index
    %20 = vector.load %arg4[%c0_11, %c0_12, %c0_13] : memref<1x16x16xf32, #tpu.memory_space<vmem>>, vector<1x16x16xf32>
    %21 = vector.shape_cast %20 : vector<1x16x16xf32> to vector<16x16xf32>
    %22 = vector.shape_cast %19 : vector<16x16xf32> to vector<1x16x16xf32>
    tpu.vector_store %arg4[%c0_11, %c0_12, %c0_13], %22 {strides = array<i32>} : memref<1x16x16xf32, #tpu.memory_space<vmem>>, vector<1x16x16xf32>,
    return
  }
  func.func @transform_0(%arg0: i32) -> (i32, i32, i32) {
    %c0_i32 = arith.constant 0 : i32
    %c0_i32_0 = arith.constant 0 : i32
    %c0_i32_1 = arith.constant 0 : i32
    return %arg0, %c0_i32, %c0_i32_0 : i32, i32, i32
  }
  func.func @transform_1(%arg0: i32) -> (i32, i32) {
    %c0_i32 = arith.constant 0 : i32
    %c0_i32_0 = arith.constant 0 : i32
    %c0_i32_1 = arith.constant 0 : i32
    return %c0_i32, %c0_i32_0 : i32, i32
  }
  func.func @transform_2(%arg0: i32) -> (i32, i32) {
    %c0_i32 = arith.constant 0 : i32
    %c0_i32_0 = arith.constant 0 : i32
    %c0_i32_1 = arith.constant 0 : i32
    return %c0_i32, %c0_i32_0 : i32, i32
  }
  func.func @transform_3(%arg0: i32) -> (i32, i32, i32) {
    %c0_i32 = arith.constant 0 : i32
    %c0_i32_0 = arith.constant 0 : i32
    %c0_i32_1 = arith.constant 0 : i32
    return %arg0, %c0_i32, %c0_i32_0 : i32, i32, i32
  }
}

</mosaic_0001>

<llo_original>
// kernel: tpu_custom_call.1
$region0: #{tpu_custom_call.1}
  #allocation0 [shape = 'u32[]', space=smem, size = 0x4, offset = 0x4, fixed_abs, tag = 'smem constant byte address 0x4 - core index']
  #allocation1 [shape = 'u32[144,128]{1,0:T(1,128)}', space=vmem, size = 0x12000, scoped, tag = 'internal scratch']
  %s0 = inlined_call_operand.vmem [shape: f32[2,16,4], index: 0, kind: input, shape index: {}]
  %s1 = inlined_call_operand.vmem [shape: f32[4,8], index: 1, kind: input, shape index: {}]
  %s2 = inlined_call_operand.vmem [shape: f32[4,8], index: 2, kind: input, shape index: {}]
  %s3 = inlined_call_operand.hbm [shape: f32[2,16,16], index: 3, kind: output, shape index: {}]
  %s4 = sld [smem:[#allocation0]]
  $region45: #{tpu_custom_call.1} parent=0
    _
  %s6 = ssub.s32 1, %s4
  %s7 = scalar_select 0, %s6, %s4
  $region1: #{tpu_custom_call.1} parent=0
    #allocation2 [shape = 'u8[16384]{0}', space=vmem, size = 0x4000, scoped, tag = 'output window, operand 0']
    #allocation3 [shape = 's32[2]{0}', space=sflag, size = 0x8, scoped, tag = 'scoped memory for tpu_custom_call.1']
    %8 = vsyncpa [#allocation3], 0
    %s9 = scalar_lea.sflag [#allocation3], 1
    %10 = vsyncpa %s9, 0
    loop: start=0, step=1, limit=4
    $region2: #{tpu_custom_call.1} parent=1 // loop_pre_header
      _
    $region3: #{tpu_custom_call.1} parent=1 // loop_header
      %s12 = sphi 0, %s16
      %p13 = scmp.ge.s32.totalorder %s12, 4
      %s22 = sphi 0, %s24
      %s25 = sphi 0, %s22
      %s26 = sphi 0, %s25
      %s42 = sphi 0, %s26
      %s46 = sphi 0, %s46
      %s48 = sphi 0, %s46
      %s49 = sphi 0, %s48
      %s63 = sphi 0, %s49
      %s67 = sphi 0, %s67
      %s69 = sphi 0, %s67
      %s70 = sphi 0, %s69
      %s84 = sphi 0, %s70
      %s90 = sphi 0, %s92
      %s93 = sphi 0, %s90
      %s94 = sphi 0, %s93
      %s110 = sphi 0, %s94
    $region4: #{tpu_custom_call.1} parent=1 // loop_header_branch
      %15 = sbr.rel (%p13) target = $region8
    $region5: #{tpu_custom_call.1} parent=1 // loop_body
      %s17 = ssub.s32 %s12, 1
      %s18 = ssub.s32 %s12, 2
      %s19 = sadd.s32 %s12, 1
      %s20 = ssub.s32 %s12, %s19
      %p21 = scmp.eq.s32.totalorder %s20, 0
      %s23 = sadd.s32 %s22, 1
      %s24 = scalar_select %p21, %s22, %s23
      %p27 = pneg %p21
      %p28 = scmp.eq.s32.totalorder %s12, 1
      %p29 = por %p27, %p28
      %p30 = scmp.ne.s32.totalorder %s22, %s25
      %p31 = scmp.eq.s32.totalorder %s12, 0
      %p32 = por %p30, %p31
      %p33 = scmp.ne.s32.totalorder %s22, %s25
      %p34 = scmp.eq.s32.totalorder %s17, 1
      %p35 = por %p33, %p34
      %p36 = scmp.ne.s32.totalorder %s25, %s26
      %p37 = scmp.eq.s32.totalorder %s17, 0
      %p38 = por %p36, %p37
      %p39 = scmp.ne.s32.totalorder %s25, %s26
      %p40 = scmp.eq.s32.totalorder %s18, 1
      %p41 = por %p39, %p40
      %p43 = scmp.ne.s32.totalorder %s26, %s42
      %p44 = scmp.eq.s32.totalorder %s18, 0
      %p45 = por %p43, %p44
      %s47 = sadd.s32 %s46, 1
      %p50 = scmp.eq.s32.totalorder %s12, 1
      %p51 = scmp.ne.s32.totalorder %s46, %s48
      %p52 = scmp.eq.s32.totalorder %s12, 0
      %p53 = por %p51, %p52
      %p54 = scmp.ne.s32.totalorder %s46, %s48
      %p55 = scmp.eq.s32.totalorder %s17, 1
      %p56 = por %p54, %p55
      %p57 = scmp.ne.s32.totalorder %s48, %s49
      %p58 = scmp.eq.s32.totalorder %s17, 0
      %p59 = por %p57, %p58
      %p60 = scmp.ne.s32.totalorder %s48, %s49
      %p61 = scmp.eq.s32.totalorder %s18, 1
      %p62 = por %p60, %p61
      %p64 = scmp.ne.s32.totalorder %s49, %s63
      %p65 = scmp.eq.s32.totalorder %s18, 0
      %p66 = por %p64, %p65
      %s68 = sadd.s32 %s67, 1
      %p71 = scmp.eq.s32.totalorder %s12, 1
      %p72 = scmp.ne.s32.totalorder %s67, %s69
      %p73 = scmp.eq.s32.totalorder %s12, 0
      %p74 = por %p72, %p73
      %p75 = scmp.ne.s32.totalorder %s67, %s69
      %p76 = scmp.eq.s32.totalorder %s17, 1
      %p77 = por %p75, %p76
      %p78 = scmp.ne.s32.totalorder %s69, %s70
      %p79 = scmp.eq.s32.totalorder %s17, 0
      %p80 = por %p78, %p79
      %p81 = scmp.ne.s32.totalorder %s69, %s70
      %p82 = scmp.eq.s32.totalorder %s18, 1
      %p83 = por %p81, %p82
      %p85 = scmp.ne.s32.totalorder %s70, %s84
      %p86 = scmp.eq.s32.totalorder %s18, 0
      %p87 = por %p85, %p86
      %s88 = ssub.s32 %s12, %s19
      %p89 = scmp.eq.s32.totalorder %s88, 0
      %s91 = sadd.s32 %s90, 1
      %s92 = scalar_select %p89, %s90, %s91
      %p95 = pneg %p89
      %p96 = scmp.eq.s32.totalorder %s12, 1
      %p97 = por %p95, %p96
      %p98 = scmp.ne.s32.totalorder %s90, %s93
      %p99 = scmp.eq.s32.totalorder %s12, 0
      %p100 = por %p98, %p99
      %p101 = scmp.ne.s32.totalorder %s90, %s93
      %p102 = scmp.eq.s32.totalorder %s17, 1
      %p103 = por %p101, %p102
      %p104 = scmp.ne.s32.totalorder %s93, %s94
      %p105 = scmp.eq.s32.totalorder %s17, 0
      %p106 = por %p104, %p105
      %p107 = scmp.ne.s32.totalorder %s93, %s94
      %p108 = scmp.eq.s32.totalorder %s18, 1
      %p109 = por %p107, %p108
      %p111 = scmp.ne.s32.totalorder %s94, %s110
      %p112 = scmp.eq.s32.totalorder %s18, 0
      %p113 = por %p111, %p112
      %p114 = scmp.le.s32.totalorder 1, %s12
      %p115 = scmp.lt.s32.totalorder %s12, 3
      %p116 = pnand %p114, %p115
      %p117 = pneg %p116
      // Predicated region
      $region9: #{tpu_custom_call.1} parent=5 // pred_check
        _
      $region10: #{tpu_custom_call.1} parent=5 // pred_check_branch
        %119 = sbr.rel (%p116) target = $region12
      $region11: #{tpu_custom_call.1} parent=5 // pred_region
        %s120 = ssub.s32 %s12, 1
        // Predicated region
        $region13: #{tpu_custom_call.1} parent=11 // pred_check
          %p121 = pneg %p59
        $region14: #{tpu_custom_call.1} parent=11 // pred_check_branch
          %123 = sbr.rel (%p121) target = $region16
        $region15: #{tpu_custom_call.1} parent=11 // pred_region
          _
        $region16: #{tpu_custom_call.1} parent=11 // pred_fallthru
          _
        // Predicated region
        $region17: #{tpu_custom_call.1} parent=11 // pred_check
          %p124 = pneg %p80
        $region18: #{tpu_custom_call.1} parent=11 // pred_check_branch
          %126 = sbr.rel (%p124) target = $region20
        $region19: #{tpu_custom_call.1} parent=11 // pred_region
          _
        $region20: #{tpu_custom_call.1} parent=11 // pred_fallthru
          _
      $region12: #{tpu_custom_call.1} parent=5 // pred_fallthru
        _
      %p127 = scmp.lt.s32.totalorder %s12, 2
      // Predicated region
      $region21: #{tpu_custom_call.1} parent=5 // pred_check
        %p128 = pneg %p127
      $region22: #{tpu_custom_call.1} parent=5 // pred_check_branch
        %130 = sbr.rel (%p128) target = $region24
      $region23: #{tpu_custom_call.1} parent=5 // pred_region
        // Predicated region
        $region25: #{tpu_custom_call.1} parent=23 // pred_check
          %p131 = pneg %p32
        $region26: #{tpu_custom_call.1} parent=23 // pred_check_branch
          %133 = sbr.rel (%p131) target = $region28
        $region27: #{tpu_custom_call.1} parent=23 // pred_region
          %p134 = scmp.lt.s32.totalorder %s12, 1
          %s135 = scalar_select %p134, %s12, 1
          %s136 = smul.addr %s135, 2
          %s137 = smul.addr %s136, 8
          %s138 = scalar_lea.vmem %s0, %s137
        $region28: #{tpu_custom_call.1} parent=23 // pred_fallthru
          _
      $region24: #{tpu_custom_call.1} parent=5 // pred_fallthru
        _
      %p139 = scmp.le.s32.totalorder 1, %s12
      %p140 = scmp.lt.s32.totalorder %s12, 3
      %p141 = pnand %p139, %p140
      %p142 = pneg %p141
      // Predicated region
      $region29: #{tpu_custom_call.1} parent=5 // pred_check
        _
      $region30: #{tpu_custom_call.1} parent=5 // pred_check_branch
        %144 = sbr.rel (%p141) target = $region32
      $region31: #{tpu_custom_call.1} parent=5 // pred_region
        %s145 = ssub.s32 %s12, 1
        %p146 = scmp.lt.s32.totalorder %s17, 1
        %s147 = scalar_select %p146, %s17, 1
        %s148 = smul.addr %s147, 2
        %s149 = smul.addr %s148, 8
        %s150 = scalar_lea.vmem %s0, %s149
        %p151 = pneg %p38
        %p152 = pneg %p35
        %p153 = pneg %p59
        %p154 = pneg %p56
        %p155 = pneg %p80
        %p156 = pneg %p77
        %p157 = pneg %p106
        %p158 = pneg %p103
        %s159 = sand.u32 %s93, 1
        %s160 = scalar_lea.sflag [#allocation3], %s159
        %s161 = sand.u32 %s93, 1
        %s162 = smul.addr %s161, 16
        %s163 = scalar_lea.vmem [#allocation2], %s162
        %p164 = scmp.lt.s32.totalorder %s17, 1
        %s165 = scalar_select %p164, %s17, 1
        %s166 = smul.addr %s165, 2
        %s167 = smul.addr %s166, 8
        %s168 = scalar_lea.vmem %s0, %s167
        %v169 = vld [vmem:[%s168] sm:$0xff]
        %v170 = vld [vmem:[%s168 + $0x8] sm:$0xff]
        %v171 = vld [vmem:[%s1] sm:$0xf]
        %vm172 = vcmask 31744
        %v174 = vsel %vm172, %v169, 0
        %v177 = vsel %vm172, %v170, 0
        %vm179 = vcmask 1043456
        %v181 = vsel %vm179, %v171, 0
        %183 = vmatprep.subr.mxu0 0.0
        %184 = vmatpush1.msra.mxu0 0.0
        %185 = vmatprep.subr.mxu0 0.0
        %186 = vmatpush1.msra.mxu0 0.0
        %187 = vmatprep.subr.mxu0 0.0
        %188 = vmatpush1.msra.mxu0 0.0
        %189 = vmatprep.subr.mxu0 0.0
        %190 = vmatpush1.msra.mxu0 0.0
        %191 = vmatprep.subr.mxu0 0.0
        %192 = vmatpush1.msra.mxu0 0.0
        %193 = vmatprep.subr.mxu0 0.0
        %194 = vmatpush1.msra.mxu0 0.0
        %195 = vmatprep.subr.mxu0 0.0
        %196 = vmatpush1.msra.mxu0 0.0
        %197 = vmatprep.subr.mxu0 0.0
        %198 = vmatpush1.msra.mxu0 0.0
        %199 = vmatprep.subr.mxu0 0.0
        %200 = vmatpush1.msra.mxu0 0.0
        %201 = vmatprep.subr.mxu0 0.0
        %202 = vmatpush1.msra.mxu0 0.0
        %203 = vmatprep.subr.mxu0 0.0
        %204 = vmatpush1.msra.mxu0 0.0
        %205 = vmatprep.subr.mxu0 0.0
        %206 = vmatpush1.msra.mxu0 0.0
        %207 = vmatprep.subr.mxu0 0.0
        %208 = vmatpush1.msra.mxu0 0.0
        %209 = vmatprep.subr.mxu0 0.0
        %210 = vmatpush1.msra.mxu0 0.0
        %211 = vmatprep.subr.mxu0 0.0
        %212 = vmatpush1.msra.mxu0 0.0
        %213 = vmatprep.subr.mxu0 0.0
        %214 = vmatpush1.msra.mxu0 %v181
        %215 = vmatprep.subr.mxu0 0.0
        %216 = vmatpush2.msra.mxu0 0.0
        %217 = vmatprep.subr.mxu0 0.0
        %218 = vmatpush2.msra.mxu0 0.0
        %219 = vmatprep.subr.mxu0 0.0
        %220 = vmatpush2.msra.mxu0 0.0
        %221 = vmatprep.subr.mxu0 0.0
        %222 = vmatpush2.msra.mxu0 0.0
        %223 = vmatprep.subr.mxu0 0.0
        %224 = vmatpush2.msra.mxu0 0.0
        %225 = vmatprep.subr.mxu0 0.0
        %226 = vmatpush2.msra.mxu0 0.0
        %227 = vmatprep.subr.mxu0 0.0
        %228 = vmatpush2.msra.mxu0 0.0
        %229 = vmatprep.subr.mxu0 0.0
        %230 = vmatpush2.msra.mxu0 0.0
        %231 = vmatprep.subr.mxu0 0.0
        %232 = vmatpush2.msra.mxu0 0.0
        %233 = vmatprep.subr.mxu0 0.0
        %234 = vmatpush2.msra.mxu0 0.0
        %235 = vmatprep.subr.mxu0 0.0
        %236 = vmatpush2.msra.mxu0 0.0
        %237 = vmatprep.subr.mxu0 0.0
        %238 = vmatpush2.msra.mxu0 0.0
        %239 = vmatprep.subr.mxu0 0.0
        %240 = vmatpush2.msra.mxu0 0.0
        %241 = vmatprep.subr.mxu0 0.0
        %242 = vmatpush2.msra.mxu0 0.0
        %243 = vmatprep.subr.mxu0 0.0
        %244 = vmatpush2.msra.mxu0 0.0
        %245 = vmatprep.subr.mxu0 0.0
        %246 = vmatpush2.msra.mxu0 0.0
        %247 = vmatprep.mubr.f32.mxu0 0.0
        %248 = vmatmul.mubr.f32.gmra.mxu0 %v174
        %v249 = vpop.f32.mrf.mxu0
        %v250 = vadd.f32 0.0, %v249
        %v251 = vpop.f32.mrf.mxu0
        %252 = vmatprep.mubr.f32.mxu0 0.0
        %253 = vmatmul.mubr.f32.gmra.mxu0 %v177
        %v254 = vpop.f32.mrf.mxu0
        %v255 = vadd.f32 0.0, %v254
        %v256 = vpop.f32.mrf.mxu0
        %257 = vdwg.mxu0
        %v258 = vld [vmem:[%s2] sm:$0xf]
        %v260 = vsel %vm179, %v258, 0
        %262 = vmatprep.subr.mxu0 0.0
        %263 = vmatpush1.msra.mxu0 0.0
        %264 = vmatprep.subr.mxu0 0.0
        %265 = vmatpush1.msra.mxu0 0.0
        %266 = vmatprep.subr.mxu0 0.0
        %267 = vmatpush1.msra.mxu0 0.0
        %268 = vmatprep.subr.mxu0 0.0
        %269 = vmatpush1.msra.mxu0 0.0
        %270 = vmatprep.subr.mxu0 0.0
        %271 = vmatpush1.msra.mxu0 0.0
        %272 = vmatprep.subr.mxu0 0.0
        %273 = vmatpush1.msra.mxu0 0.0
        %274 = vmatprep.subr.mxu0 0.0
        %275 = vmatpush1.msra.mxu0 0.0
        %276 = vmatprep.subr.mxu0 0.0
        %277 = vmatpush1.msra.mxu0 0.0
        %278 = vmatprep.subr.mxu0 0.0
        %279 = vmatpush1.msra.mxu0 0.0
        %280 = vmatprep.subr.mxu0 0.0
        %281 = vmatpush1.msra.mxu0 0.0
        %282 = vmatprep.subr.mxu0 0.0
        %283 = vmatpush1.msra.mxu0 0.0
        %284 = vmatprep.subr.mxu0 0.0
        %285 = vmatpush1.msra.mxu0 0.0
        %286 = vmatprep.subr.mxu0 0.0
        %287 = vmatpush1.msra.mxu0 0.0
        %288 = vmatprep.subr.mxu0 0.0
        %289 = vmatpush1.msra.mxu0 0.0
        %290 = vmatprep.subr.mxu0 0.0
        %291 = vmatpush1.msra.mxu0 0.0
        %292 = vmatprep.subr.mxu0 0.0
        %293 = vmatpush1.msra.mxu0 %v260
        %294 = vmatprep.subr.mxu0 0.0
        %295 = vmatpush2.msra.mxu0 0.0
        %296 = vmatprep.subr.mxu0 0.0
        %297 = vmatpush2.msra.mxu0 0.0
        %298 = vmatprep.subr.mxu0 0.0
        %299 = vmatpush2.msra.mxu0 0.0
        %300 = vmatprep.subr.mxu0 0.0
        %301 = vmatpush2.msra.mxu0 0.0
        %302 = vmatprep.subr.mxu0 0.0
        %303 = vmatpush2.msra.mxu0 0.0
        %304 = vmatprep.subr.mxu0 0.0
        %305 = vmatpush2.msra.mxu0 0.0
        %306 = vmatprep.subr.mxu0 0.0
        %307 = vmatpush2.msra.mxu0 0.0
        %308 = vmatprep.subr.mxu0 0.0
        %309 = vmatpush2.msra.mxu0 0.0
        %310 = vmatprep.subr.mxu0 0.0
        %311 = vmatpush2.msra.mxu0 0.0
        %312 = vmatprep.subr.mxu0 0.0
        %313 = vmatpush2.msra.mxu0 0.0
        %314 = vmatprep.subr.mxu0 0.0
        %315 = vmatpush2.msra.mxu0 0.0
        %316 = vmatprep.subr.mxu0 0.0
        %317 = vmatpush2.msra.mxu0 0.0
        %318 = vmatprep.subr.mxu0 0.0
        %319 = vmatpush2.msra.mxu0 0.0
        %320 = vmatprep.subr.mxu0 0.0
        %321 = vmatpush2.msra.mxu0 0.0
        %322 = vmatprep.subr.mxu0 0.0
        %323 = vmatpush2.msra.mxu0 0.0
        %324 = vmatprep.subr.mxu0 0.0
        %325 = vmatpush2.msra.mxu0 0.0
        %326 = vmatprep.mubr.f32.mxu0 0.0
        %327 = vmatmul.mubr.f32.gmra.mxu0 %v174
        %v328 = vpop.f32.mrf.mxu0
        %v329 = vadd.f32 0.0, %v328
        %v330 = vpop.f32.mrf.mxu0
        %331 = vmatprep.mubr.f32.mxu0 0.0
        %332 = vmatmul.mubr.f32.gmra.mxu0 %v177
        %v333 = vpop.f32.mrf.mxu0
        %v334 = vadd.f32 0.0, %v333
        %v335 = vpop.f32.mrf.mxu0
        %336 = vdwg.mxu0
        %vm337 = vcmask 64512
        %v339 = vsel %vm337, %v250, 0
        %v342 = vsel %vm337, %v255, 0
        %v345 = vsel %vm337, %v329, 0
        %v348 = vsel %vm337, %v334, 0
        %350 = vmatprep.subr.mxu0 0.0
        %351 = vmatpush1.xpose.msra.mxu0 0.0
        %352 = vmatprep.subr.mxu0 0.0
        %353 = vmatpush1.xpose.msra.mxu0 0.0
        %354 = vmatprep.subr.mxu0 0.0
        %355 = vmatpush1.xpose.msra.mxu0 0.0
        %356 = vmatprep.subr.mxu0 0.0
        %357 = vmatpush1.xpose.msra.mxu0 0.0
        %358 = vmatprep.subr.mxu0 0.0
        %359 = vmatpush1.xpose.msra.mxu0 0.0
        %360 = vmatprep.subr.mxu0 0.0
        %361 = vmatpush1.xpose.msra.mxu0 0.0
        %362 = vmatprep.subr.mxu0 0.0
        %363 = vmatpush1.xpose.msra.mxu0 0.0
        %364 = vmatprep.subr.mxu0 0.0
        %365 = vmatpush1.xpose.msra.mxu0 0.0
        %366 = vmatprep.subr.mxu0 0.0
        %367 = vmatpush1.xpose.msra.mxu0 0.0
        %368 = vmatprep.subr.mxu0 0.0
        %369 = vmatpush1.xpose.msra.mxu0 0.0
        %370 = vmatprep.subr.mxu0 0.0
        %371 = vmatpush1.xpose.msra.mxu0 0.0
        %372 = vmatprep.subr.mxu0 0.0
        %373 = vmatpush1.xpose.msra.mxu0 0.0
        %374 = vmatprep.subr.mxu0 0.0
        %375 = vmatpush1.xpose.msra.mxu0 0.0
        %376 = vmatprep.subr.mxu0 0.0
        %377 = vmatpush1.xpose.msra.mxu0 0.0
        %378 = vmatprep.subr.mxu0 0.0
        %379 = vmatpush1.xpose.msra.mxu0 %v348
        %380 = vmatprep.subr.mxu0 0.0
        %381 = vmatpush1.xpose.msra.mxu0 %v345
        %382 = vmatprep.subr.mxu0 0.0
        %383 = vmatpush2.xpose.msra.mxu0 0.0
        %384 = vmatprep.subr.mxu0 0.0
        %385 = vmatpush2.xpose.msra.mxu0 0.0
        %386 = vmatprep.subr.mxu0 0.0
        %387 = vmatpush2.xpose.msra.mxu0 0.0
        %388 = vmatprep.subr.mxu0 0.0
        %389 = vmatpush2.xpose.msra.mxu0 0.0
        %390 = vmatprep.subr.mxu0 0.0
        %391 = vmatpush2.xpose.msra.mxu0 0.0
        %392 = vmatprep.subr.mxu0 0.0
        %393 = vmatpush2.xpose.msra.mxu0 0.0
        %394 = vmatprep.subr.mxu0 0.0
        %395 = vmatpush2.xpose.msra.mxu0 0.0
        %396 = vmatprep.subr.mxu0 0.0
        %397 = vmatpush2.xpose.msra.mxu0 0.0
        %398 = vmatprep.subr.mxu0 0.0
        %399 = vmatpush2.xpose.msra.mxu0 0.0
        %400 = vmatprep.subr.mxu0 0.0
        %401 = vmatpush2.xpose.msra.mxu0 0.0
        %402 = vmatprep.subr.mxu0 0.0
        %403 = vmatpush2.xpose.msra.mxu0 0.0
        %404 = vmatprep.subr.mxu0 0.0
        %405 = vmatpush2.xpose.msra.mxu0 0.0
        %406 = vmatprep.subr.mxu0 0.0
        %407 = vmatpush2.xpose.msra.mxu0 0.0
        %408 = vmatprep.subr.mxu0 0.0
        %409 = vmatpush2.xpose.msra.mxu0 0.0
        %410 = vmatprep.subr.mxu0 0.0
        %411 = vmatpush2.xpose.msra.mxu0 0.0
        %412 = vmatprep.subr.mxu0 0.0
        %413 = vmatpush2.xpose.msra.mxu0 0.0
        %414 = vmatprep.mubr.f32.mxu0 0.0
        %415 = vmatmul.mubr.f32.gmra.mxu0 %v339
        %v416 = vpop.f32.mrf.mxu0
        %v417 = vadd.f32 0.0, %v416
        %v418 = vpop.f32.mrf.mxu0
        %419 = vmatprep.mubr.f32.mxu0 0.0
        %420 = vmatmul.mubr.f32.gmra.mxu0 %v342
        %v421 = vpop.f32.mrf.mxu0
        %v422 = vadd.f32 0.0, %v421
        %v423 = vpop.f32.mrf.mxu0
        %424 = vdwg.mxu0
        %v425 = vmul.f32 %v417, 0.35355338
        %v426 = vmul.f32 %v422, 0.35355338
        %vm427 = vcmask 130048
        %v428 = vsel %vm427, %v425, -inf
        %429 = vmax.xlane.f32.xlu0 %v428
        %v430 = vpop.xlane.xlu0 %429
        %v431 = vsel %vm427, %v426, -inf
        %432 = vmax.xlane.f32.xlu0 %v431
        %v433 = vpop.xlane.xlu0 %432
        %v434 = vsub.f32 %v425, %v430
        %v435 = vsub.f32 %v426, %v433
        %v436 = vmul.f32 %v434, 1.442695
        %v437 = vpow.pop %v436
        %v438 = vmul.f32 %v435, 1.442695
        %v439 = vpow.pop %v438
        %v440 = vsel %vm427, %v437, 0.0
        %441 = vadd.xlane.f32.xlu0 %v440
        %v442 = vpop.xlane.xlu0 %441
        %v443 = vsel %vm427, %v439, 0.0
        %444 = vadd.xlane.f32.xlu0 %v443
        %v445 = vpop.xlane.xlu0 %444
        %v446 = vrcp.pop %v442
        %v447 = vrcp.pop %v445
        %v448 = vmul.f32 %v437, %v446
        %v449 = vmul.f32 %v439, %v447
        %450 = vst.msk [vmem:[%s163] sm:$0xff] %vm427, %v448
        %451 = vst.msk [vmem:[%s163 + $0x8] sm:$0xff] %vm427, %v449
        %s452 = sand.u32 %s93, 1
        %s453 = scalar_lea.sflag [#allocation3], %s452
        %s454 = sand.u32 %s93, 1
        %s455 = smul.addr %s454, 16
        %s456 = scalar_lea.vmem [#allocation2], %s455
        // Predicated region
        $region33: #{tpu_custom_call.1} parent=31 // pred_check
          %p457 = pneg %p103
        $region34: #{tpu_custom_call.1} parent=31 // pred_check_branch
          %459 = sbr.rel (%p457) target = $region36
        $region35: #{tpu_custom_call.1} parent=31 // pred_region
          %s461 = ssub.s32 256, 256
          %462 = vsyncadd %s453, %s461
          %s463 = smul.addr %s17, 2
          %s464 = smul.addr %s463, 128
          %s465 = scalar_lea.hbm %s3, %s464
          %s466 = sshll.u32 %s456, 4
          %s467 = int_to_ptr.vmem [resolvable:$true] %s466
          %472 = dma.vmem_to_hbm [thread:$0]  %s467, 256, %s465, %s453, 128, 128, 8
        $region36: #{tpu_custom_call.1} parent=31 // pred_fallthru
          _
      $region32: #{tpu_custom_call.1} parent=5 // pred_fallthru
        _
      %p473 = scmp.le.s32.totalorder 2, %s12
      // Predicated region
      $region37: #{tpu_custom_call.1} parent=5 // pred_check
        %p474 = pneg %p473
      $region38: #{tpu_custom_call.1} parent=5 // pred_check_branch
        %476 = sbr.rel (%p474) target = $region40
      $region39: #{tpu_custom_call.1} parent=5 // pred_region
        %s477 = ssub.s32 %s12, 2
        // Predicated region
        $region41: #{tpu_custom_call.1} parent=39 // pred_check
          %p478 = pneg %p109
        $region42: #{tpu_custom_call.1} parent=39 // pred_check_branch
          %480 = sbr.rel (%p478) target = $region44
        $region43: #{tpu_custom_call.1} parent=39 // pred_region
          %s481 = sand.u32 %s94, 1
          %s482 = scalar_lea.sflag [#allocation3], %s481
          %s483 = sand.u32 %s94, 1
          %s484 = smul.addr %s483, 16
          %s485 = scalar_lea.vmem [#allocation2], %s484
          %486 = dma.done %s482, 256
        $region44: #{tpu_custom_call.1} parent=39 // pred_fallthru
          _
      $region40: #{tpu_custom_call.1} parent=5 // pred_fallthru
        _
    $region6: #{tpu_custom_call.1} parent=1 // loop_footer
      %s16 = sadd.s32 1, %s12
    $region7: #{tpu_custom_call.1} parent=1 // loop_footer_branch
      %11 = sbr.rel target = $region3
    $region8: #{tpu_custom_call.1} parent=1 // loop_exit
      _
    %487 = vsyncpa [#allocation3], 1
    %s488 = scalar_lea.sflag [#allocation3], 1
    %489 = vsyncpa %s488, 1

</llo_original>
